<compile_context>
chip_gen: v7x
topology: tpu7x:2x2x1
jax: 0.10.0
libtpu: 0.0.40
codegen_flags: <defaults>
</compile_context>

<pallas_src>
import functools

import jax
import jax.numpy as jnp
from jax.experimental import pallas as pl
from jax.experimental.pallas import tpu as pltpu

# bf16 halves the dominant HBM writeback (h); set to jnp.float32 to match the
# PyTorch module's output dtype exactly (numerics already relaxed by bf16 MXU).
H_OUT_DTYPE = jnp.bfloat16


def _round_up(x, m):
    return (x + m - 1) // m * m


def insmlp_kernel(x_ref, w1_ref, b1_ref, w2_ref, b2_ref, prob_ref, h_ref):
    """Fused feature_ex (Linear+ReLU) and classifier (Linear) on the MXU.

    x_ref:    (TILE_N, D)     f32 or bf16 (cast to bf16 on the VPU here)
    w1_ref:   (D, H_PAD)      bf16  (VMEM-resident across grid steps)
    b1_ref:   (1, H_PAD)      f32
    w2_ref:   (H_PAD, C_PAD)  bf16  (resident, lane-padded classifier)
    b2_ref:   (1, C_PAD)      f32
    prob_ref: (TILE_N, C_PAD) f32   (lane-dense store)
    h_ref:    (TILE_N, H_PAD) bf16  (lane-dense store)
    """
    x = x_ref[...].astype(jnp.bfloat16)

    # feature extractor: h = relu(x @ W1 + b1)   (bf16 MXU inputs, f32 accum)
    h32 = jnp.dot(x, w1_ref[...], preferred_element_type=jnp.float32)
    h32 = jnp.maximum(h32 + b1_ref[...], 0.0)          # f32 elementwise
    h16 = h32.astype(jnp.bfloat16)
    h_ref[...] = h16.astype(h_ref.dtype)

    # classifier: logits = h @ W2 + b2           (bf16 MXU inputs, f32 accum)
    logits = jnp.dot(h16, w2_ref[...], preferred_element_type=jnp.float32)
    prob_ref[...] = logits + b2_ref[...]                # lane-dense store


def prepare_params(w1, b1, w2, b2, n_class):
    """One-time parameter prep — hoisted out of the per-call hot path.

    Expects W1: (D, H), W2: (H, n_class), i.e. PyTorch nn.Linear `weight.T`
    (transpose once here, not per call).  Pads H and n_class up to lane
    multiples (128) and casts the matmul operands to bf16.
    """
    D, H = w1.shape
    C = n_class
    H_PAD = _round_up(H, 128)
    C_PAD = _round_up(max(C, 1), 128)
    w1_p = jnp.pad(w1, ((0, 0), (0, H_PAD - H))).astype(jnp.bfloat16)
    b1_p = jnp.pad(jnp.reshape(b1, (1, H)),
                   ((0, 0), (0, H_PAD - H))).astype(jnp.float32)
    w2_p = jnp.pad(w2, ((0, H_PAD - H), (0, C_PAD - C))).astype(jnp.bfloat16)
    b2_p = jnp.pad(jnp.reshape(b2, (1, C)),
                   ((0, 0), (0, C_PAD - C))).astype(jnp.float32)
    return w1_p, b1_p, w2_p, b2_p


@functools.partial(jax.jit, static_argnames=("n_class", "h_dim"))
def insmlp_forward(inp, w1_p, b1_p, w2_p, b2_p, *, n_class, h_dim):
    """inp: (1, N, D) like the PyTorch module (batch dim squeezed inside).

    w1_p / b1_p / w2_p / b2_p must come from prepare_params() (padded + bf16).
    """
    x = jnp.squeeze(inp, axis=0)                      # glue: squeeze(0)
    N, D = x.shape
    H_PAD = w1_p.shape[1]
    C_PAD = w2_p.shape[1]

    # ---- instance-axis tiling ----------------------------------------------
    TILE_N_MAX = 512          # keeps activation tiles well under v7x's 64 MiB VMEM
    ROW_ALIGN = 16            # bf16 packs 16 rows per sublane group
    if N <= 2 * ROW_ALIGN:
        num_tiles = 1
    else:
        # >= 2 grid steps so both v7x TensorCores get work; cdiv-based split
        # keeps tail padding to at most ROW_ALIGN * num_tiles rows.
        num_tiles = max(pl.cdiv(N, TILE_N_MAX), 2)
    tile_n = _round_up(pl.cdiv(N, num_tiles), ROW_ALIGN)
    n_pad = tile_n * num_tiles
    grid = (num_tiles,)

    # Row padding only when required; fuse the bf16 cast into the pad pass.
    if n_pad != N:
        x_in = jnp.pad(x, ((0, n_pad - N), (0, 0))).astype(jnp.bfloat16)
    else:
        x_in = x                                       # kernel casts on the VPU

    out_shapes = (
        jax.ShapeDtypeStruct((n_pad, C_PAD), jnp.float32),   # logits (lane-padded)
        jax.ShapeDtypeStruct((n_pad, H_PAD), H_OUT_DTYPE),   # h (lane-padded)
    )

    # ---- VMEM budget: double-buffered tiles + resident weights + headroom ---
    xb = x_in.dtype.itemsize
    hb = jnp.dtype(H_OUT_DTYPE).itemsize
    vmem_need = (2 * tile_n * D * xb                      # x tiles
                 + 2 * tile_n * C_PAD * 4                 # logits tiles
                 + 2 * tile_n * H_PAD * hb                # h tiles
                 + 2 * (D * H_PAD * 2 + H_PAD * 4)        # W1 + b1
                 + 2 * (H_PAD * C_PAD * 2 + C_PAD * 4))   # W2 + b2
    vmem_limit = int(min(max(2 * vmem_need + (4 << 20), 32 << 20), 64 << 20))

    cost = pl.CostEstimate(
        flops=2 * n_pad * (D * H_PAD + H_PAD * C_PAD),
        transcendentals=0,
        bytes_accessed=(n_pad * D * xb + D * H_PAD * 2 + H_PAD * 4
                        + H_PAD * C_PAD * 2 + C_PAD * 4
                        + n_pad * C_PAD * 4 + n_pad * H_PAD * hb),
    )

    class_prob, h = pl.pallas_call(
        insmlp_kernel,
        out_shape=out_shapes,
        grid=grid,
        in_specs=[
            pl.BlockSpec((tile_n, D), lambda i: (i, 0)),      # x tile (streamed)
            pl.BlockSpec((D, H_PAD), lambda i: (0, 0)),       # W1 (resident)
            pl.BlockSpec((1, H_PAD), lambda i: (0, 0)),       # b1 (resident)
            pl.BlockSpec((H_PAD, C_PAD), lambda i: (0, 0)),   # W2 (resident)
            pl.BlockSpec((1, C_PAD), lambda i: (0, 0)),       # b2 (resident)
        ],
        out_specs=(
            pl.BlockSpec((tile_n, C_PAD), lambda i: (i, 0)),  # logits tile
            pl.BlockSpec((tile_n, H_PAD), lambda i: (i, 0)),  # h tile
        ),
        compiler_params=pltpu.CompilerParams(
            # "parallel" is portable across v5e/v6e/v7x; on v7x the runtime
            # shards the N axis across both TensorCores.
            dimension_semantics=("parallel",),
            vmem_limit_bytes=vmem_limit,
        ),
        cost_estimate=cost,
    )(x_in, w1_p, b1_p, w2_p, b2_p)

    # Undo wrapper-side padding; .reshape(-1, n_class) parity preserved.
    class_prob = class_prob[:N, :n_class].reshape(-1, n_class)
    h = h[:N, :h_dim]
    return class_prob, h


if __name__ == "__main__":
    # Small shapes consistent with the forward: bag of N instances, D features.
    N, D, H, N_CLASS = 8, 32, 32, 4

    key = jax.random.PRNGKey(0)
    k_in, k_w1, k_b1, k_w2, k_b2 = jax.random.split(key, 5)

    inp = jax.random.normal(k_in, (1, N, D), dtype=jnp.float32)      # (1, N, D)

    # Deterministic params, already laid out as (in, out) = PyTorch weight.T.
    w1 = jax.random.uniform(k_w1, (D, H), jnp.float32, -1.0, 1.0) / jnp.sqrt(D)
    b1 = jax.random.uniform(k_b1, (1, H), jnp.float32, -1.0, 1.0) / jnp.sqrt(D)
    w2 = jax.random.uniform(k_w2, (H, N_CLASS), jnp.float32, -1.0, 1.0) / jnp.sqrt(H)
    b2 = jax.random.uniform(k_b2, (1, N_CLASS), jnp.float32, -1.0, 1.0) / jnp.sqrt(H)

    params = prepare_params(w1, b1, w2, b2, N_CLASS)   # one-time pad/cast (hoisted)
    class_prob, h = insmlp_forward(inp, *params, n_class=N_CLASS, h_dim=H)
    jax.block_until_ready((class_prob, h))

    # Plain-JAX f32 reference; bf16 MXU inputs / bf16 h -> relaxed tolerance.
    x_ref = jnp.squeeze(inp, axis=0)
    h_ref = jnp.maximum(x_ref @ w1 + b1, 0.0)
    prob_ref = (h_ref @ w2 + b2).reshape(-1, N_CLASS)
    assert class_prob.shape == (N, N_CLASS) and h.shape == (N, H)
    assert jnp.allclose(class_prob, prob_ref, atol=3e-2, rtol=3e-2)
    assert jnp.allclose(h.astype(jnp.float32), h_ref, atol=3e-2, rtol=3e-2)

    print("KERNEL_OK")
</pallas_src>

<mosaic_0001>
module attributes {stable_mosaic.version = 11 : i64} {
  func.func @insmlp_kernel(%arg0: i32, %arg1: memref<16x32xbf16, #tpu.memory_space<vmem>>, %arg2: memref<32x128xbf16, #tpu.memory_space<vmem>>, %arg3: memref<1x128xf32, #tpu.memory_space<vmem>>, %arg4: memref<128x128xbf16, #tpu.memory_space<vmem>>, %arg5: memref<1x128xf32, #tpu.memory_space<vmem>>, %arg6: memref<16x128xf32, #tpu.memory_space<vmem>>, %arg7: memref<16x128xbf16, #tpu.memory_space<vmem>>) attributes {dimension_semantics = [#tpu.dimension_semantics<parallel>], iteration_bounds = array<i64: 1>, scalar_prefetch = 0 : i64, scratch_operands = 0 : i64, tpu.core_type = #tpu.core_type<tc>, window_params = [{transform_indices = @transform_0, window_bounds = array<i64: 16, 32>}, {pipeline_mode = #tpu.pipeline_mode<synchronous>, transform_indices = @transform_1, window_bounds = array<i64: 32, 128>}, {pipeline_mode = #tpu.pipeline_mode<synchronous>, transform_indices = @transform_2, window_bounds = array<i64: 1, 128>}, {pipeline_mode = #tpu.pipeline_mode<synchronous>, transform_indices = @transform_3, window_bounds = array<i64: 128, 128>}, {pipeline_mode = #tpu.pipeline_mode<synchronous>, transform_indices = @transform_4, window_bounds = array<i64: 1, 128>}, {transform_indices = @transform_5, window_bounds = array<i64: 16, 128>}, {transform_indices = @transform_6, window_bounds = array<i64: 16, 128>}]} {
    %c0 = arith.constant 0 : index
    %c0_0 = arith.constant 0 : index
    %0 = vector.load %arg1[%c0, %c0_0] : memref<16x32xbf16, #tpu.memory_space<vmem>>, vector<16x32xbf16>
    %c0_1 = arith.constant 0 : index
    %c0_2 = arith.constant 0 : index
    %1 = vector.load %arg2[%c0_1, %c0_2] : memref<32x128xbf16, #tpu.memory_space<vmem>>, vector<32x128xbf16>
    %cst = arith.constant dense<0.000000e+00> : vector<16x128xf32>
    %2 = tpu.matmul %0, %1, %cst {dimension_numbers = #tpu.dot_dimension_numbers<[1], [0], [0], [1], [0, 0, 1, 1], [], []>} : vector<16x32xbf16>, vector<32x128xbf16>, vector<16x128xf32> -> vector<16x128xf32>
    %c0_3 = arith.constant 0 : index
    %c0_4 = arith.constant 0 : index
    %3 = vector.load %arg3[%c0_3, %c0_4] : memref<1x128xf32, #tpu.memory_space<vmem>>, vector<1x128xf32>
    %4 = vector.broadcast %3 : vector<1x128xf32> to vector<16x128xf32>
    %5 = arith.addf %2, %4 : vector<16x128xf32>
    %cst_5 = arith.constant 0.000000e+00 : f32
    %6 = vector.broadcast %cst_5 : f32 to vector<16x128xf32>
    %7 = arith.maximumf %5, %6 : vector<16x128xf32>
    %8 = arith.truncf %7 : vector<16x128xf32> to vector<16x128xbf16>
    %c0_6 = arith.constant 0 : index
    %c0_7 = arith.constant 0 : index
    %9 = vector.load %arg7[%c0_6, %c0_7] : memref<16x128xbf16, #tpu.memory_space<vmem>>, vector<16x128xbf16>
    tpu.vector_store %arg7[%c0_6, %c0_7], %8 {strides = array<i32>} : memref<16x128xbf16, #tpu.memory_space<vmem>>, vector<16x128xbf16>,
    %c0_8 = arith.constant 0 : index
    %c0_9 = arith.constant 0 : index
    %10 = vector.load %arg4[%c0_8, %c0_9] : memref<128x128xbf16, #tpu.memory_space<vmem>>, vector<128x128xbf16>
    %cst_10 = arith.constant dense<0.000000e+00> : vector<16x128xf32>
    %11 = tpu.matmul %8, %10, %cst_10 {dimension_numbers = #tpu.dot_dimension_numbers<[1], [0], [0], [1], [0, 0, 1, 1], [], []>} : vector<16x128xbf16>, vector<128x128xbf16>, vector<16x128xf32> -> vector<16x128xf32>
    %c0_11 = arith.constant 0 : index
    %c0_12 = arith.constant 0 : index
    %12 = vector.load %arg5[%c0_11, %c0_12] : memref<1x128xf32, #tpu.memory_space<vmem>>, vector<1x128xf32>
    %13 = vector.broadcast %12 : vector<1x128xf32> to vector<16x128xf32>
    %14 = arith.addf %11, %13 : vector<16x128xf32>
    %c0_13 = arith.constant 0 : index
    %c0_14 = arith.constant 0 : index
    %15 = vector.load %arg6[%c0_13, %c0_14] : memref<16x128xf32, #tpu.memory_space<vmem>>, vector<16x128xf32>
    tpu.vector_store %arg6[%c0_13, %c0_14], %14 {strides = array<i32>} : memref<16x128xf32, #tpu.memory_space<vmem>>, vector<16x128xf32>,
    return
  }
  func.func @transform_0(%arg0: i32) -> (i32, i32) {
    %c0_i32 = arith.constant 0 : i32
    %c0_i32_0 = arith.constant 0 : i32
    return %arg0, %c0_i32 : i32, i32
  }
  func.func @transform_1(%arg0: i32) -> (i32, i32) {
    %c0_i32 = arith.constant 0 : i32
    %c0_i32_0 = arith.constant 0 : i32
    %c0_i32_1 = arith.constant 0 : i32
    return %c0_i32, %c0_i32_0 : i32, i32
  }
  func.func @transform_2(%arg0: i32) -> (i32, i32) {
    %c0_i32 = arith.constant 0 : i32
    %c0_i32_0 = arith.constant 0 : i32
    %c0_i32_1 = arith.constant 0 : i32
    return %c0_i32, %c0_i32_0 : i32, i32
  }
  func.func @transform_3(%arg0: i32) -> (i32, i32) {
    %c0_i32 = arith.constant 0 : i32
    %c0_i32_0 = arith.constant 0 : i32
    %c0_i32_1 = arith.constant 0 : i32
    return %c0_i32, %c0_i32_0 : i32, i32
  }
  func.func @transform_4(%arg0: i32) -> (i32, i32) {
    %c0_i32 = arith.constant 0 : i32
    %c0_i32_0 = arith.constant 0 : i32
    %c0_i32_1 = arith.constant 0 : i32
    return %c0_i32, %c0_i32_0 : i32, i32
  }
  func.func @transform_5(%arg0: i32) -> (i32, i32) {
    %c0_i32 = arith.constant 0 : i32
    %c0_i32_0 = arith.constant 0 : i32
    return %arg0, %c0_i32 : i32, i32
  }
  func.func @transform_6(%arg0: i32) -> (i32, i32) {
    %c0_i32 = arith.constant 0 : i32
    %c0_i32_0 = arith.constant 0 : i32
    return %arg0, %c0_i32 : i32, i32
  }
}

</mosaic_0001>

<llo_original>
// kernel: insmlp_forward.1
$region0: #{insmlp_forward.1}
  #allocation0 [shape = 'u32[]', space=smem, size = 0x4, offset = 0x4, fixed_abs, tag = 'smem constant byte address 0x4 - core index']
  #allocation1 [shape = 'u32[144,128]{1,0:T(1,128)}', space=vmem, size = 0x12000, scoped, tag = 'internal scratch']
  %s0 = inlined_call_operand.vmem [shape: bf16[16,32], index: 0, kind: input, shape index: {}]
  %s1 = inlined_call_operand.vmem [shape: bf16[32,128], index: 1, kind: input, shape index: {}]
  %s2 = inlined_call_operand.vmem [shape: f32[1,128], index: 2, kind: input, shape index: {}]
  %s3 = inlined_call_operand.hbm [shape: bf16[128,128], index: 3, kind: input, shape index: {}]
  %s4 = inlined_call_operand.vmem [shape: f32[1,128], index: 4, kind: input, shape index: {}]
  %s5 = inlined_call_operand.vmem [shape: f32[16,128], index: 5, kind: output, shape index: {0}]
  %s6 = inlined_call_operand.vmem [shape: bf16[16,128], index: 6, kind: output, shape index: {1}]
  %7 = xla_tuple %s5, %s6
  %s8 = sld [smem:[#allocation0]]
  $region42: #{insmlp_forward.1} parent=0
    _
  %s10 = ssub.s32 1, %s8
  %s11 = scalar_select 0, %s10, %s8
  $region1: #{insmlp_forward.1} parent=0
    #allocation2 [shape = 'u8[32768]{0}', space=vmem, size = 0x8000, scoped, tag = 'input window, operand 3, single buffered']
    #allocation3 [shape = 's32[1]{0}', space=sflag, size = 0x4, scoped, tag = 'scoped memory for insmlp_forward.1']
    %12 = vsyncpa [#allocation3], 0
    // Predicated region
    $region2: #{insmlp_forward.1} parent=1 // pred_check
      _
    $region3: #{insmlp_forward.1} parent=1 // pred_check_branch
      %14 = sbr.rel (0) target = $region5
    $region4: #{insmlp_forward.1} parent=1 // pred_region
      _
    $region5: #{insmlp_forward.1} parent=1 // pred_fallthru
      _
    // Predicated region
    $region6: #{insmlp_forward.1} parent=1 // pred_check
      _
    $region7: #{insmlp_forward.1} parent=1 // pred_check_branch
      %16 = sbr.rel (0) target = $region9
    $region8: #{insmlp_forward.1} parent=1 // pred_region
      _
    $region9: #{insmlp_forward.1} parent=1 // pred_fallthru
      _
    // Predicated region
    $region10: #{insmlp_forward.1} parent=1 // pred_check
      _
    $region11: #{insmlp_forward.1} parent=1 // pred_check_branch
      %18 = sbr.rel (0) target = $region13
    $region12: #{insmlp_forward.1} parent=1 // pred_region
      _
    $region13: #{insmlp_forward.1} parent=1 // pred_fallthru
      _
    // Predicated region
    $region14: #{insmlp_forward.1} parent=1 // pred_check
      _
    $region15: #{insmlp_forward.1} parent=1 // pred_check_branch
      %20 = sbr.rel (0) target = $region17
    $region16: #{insmlp_forward.1} parent=1 // pred_region
      %s22 = ssub.s32 1024, 1024
      %23 = vsyncadd [#allocation3], %s22
      %s24 = sshll.u32 [#allocation2], 4
      %s25 = int_to_ptr.vmem [resolvable:$true] %s24
      %30 = dma.hbm_to_vmem [thread:$0]  %s3, 1024, %s25, [#allocation3], 64, 64, 4
    $region17: #{insmlp_forward.1} parent=1 // pred_fallthru
      _
    // Predicated region
    $region18: #{insmlp_forward.1} parent=1 // pred_check
      _
    $region19: #{insmlp_forward.1} parent=1 // pred_check_branch
      %32 = sbr.rel (0) target = $region21
    $region20: #{insmlp_forward.1} parent=1 // pred_region
      _
    $region21: #{insmlp_forward.1} parent=1 // pred_fallthru
      _
    // Predicated region
    $region22: #{insmlp_forward.1} parent=1 // pred_check
      _
    $region23: #{insmlp_forward.1} parent=1 // pred_check_branch
      %34 = sbr.rel (0) target = $region25
    $region24: #{insmlp_forward.1} parent=1 // pred_region
      %35 = dma.done [#allocation3], 1024
    $region25: #{insmlp_forward.1} parent=1 // pred_fallthru
      _
    %v37 = vld [vmem:[%s0] sm:$0xf]
    %v38 = vld [vmem:[%s0 + $0x4] sm:$0xf]
    %v39 = vld [vmem:[%s1] sm:$0xf]
    %v40 = vld [vmem:[%s1 + $0x4] sm:$0xf]
    %v41 = vld [vmem:[%s1 + $0x8] sm:$0xf]
    %v42 = vld [vmem:[%s1 + $0xc] sm:$0xf]
    %v43 = vld [vmem:[%s2] sm:$0x1]
    %v45 = vlaneseq
    %v46 = vshrl.u32 %v45, 7
    %v47 = vsub.s32 0, %v46
    %v48 = vrot.slane %v43, %v47
    %v52 = vunpack.c.l.b16 %v37
    %v53 = vunpack.c.l.b16 %v38
    %v54 = vpack.c.b16 %v53, %v52
    %v59 = vunpack.c.l.b16 %v39
    %v60 = vunpack.c.l.b16 %v40
    %v61 = vunpack.c.l.b16 %v41
    %v62 = vunpack.c.l.b16 %v42
    %v63 = vpack.c.b16 %v60, %v59
    %v64 = vpack.c.b16 %v62, %v61
    %vm67 = vcmask 261120
    %v69 = vsel %vm67, %v54, 0
    %71 = vmatprep.subr.bf16.mxu0 0
    %72 = vmatpush1.bf16.msra.mxu0 %v63
    %73 = vmatprep.subr.bf16.mxu0 0
    %74 = vmatpush1.bf16.msra.mxu0 %v64
    %75 = vmatprep.subr.bf16.mxu0 0
    %76 = vmatpush1.bf16.msra.mxu0 0
    %77 = vmatprep.subr.bf16.mxu0 0
    %78 = vmatpush1.bf16.msra.mxu0 0
    %79 = vmatprep.subr.bf16.mxu0 0
    %80 = vmatpush1.bf16.msra.mxu0 0
    %81 = vmatprep.subr.bf16.mxu0 0
    %82 = vmatpush1.bf16.msra.mxu0 0
    %83 = vmatprep.subr.bf16.mxu0 0
    %84 = vmatpush1.bf16.msra.mxu0 0
    %85 = vmatprep.subr.bf16.mxu0 0
    %86 = vmatpush1.bf16.msra.mxu0 0
    %87 = vmatprep.subr.bf16.mxu0 0
    %88 = vmatpush1.bf16.msra.mxu0 0
    %89 = vmatprep.subr.bf16.mxu0 0
    %90 = vmatpush1.bf16.msra.mxu0 0
    %91 = vmatprep.subr.bf16.mxu0 0
    %92 = vmatpush1.bf16.msra.mxu0 0
    %93 = vmatprep.subr.bf16.mxu0 0
    %94 = vmatpush1.bf16.msra.mxu0 0
    %95 = vmatprep.subr.bf16.mxu0 0
    %96 = vmatpush1.bf16.msra.mxu0 0
    %97 = vmatprep.subr.bf16.mxu0 0
    %98 = vmatpush1.bf16.msra.mxu0 0
    %99 = vmatprep.subr.bf16.mxu0 0
    %100 = vmatpush1.bf16.msra.mxu0 0
    %101 = vmatprep.subr.bf16.mxu0 0
    %102 = vmatpush1.bf16.msra.mxu0 0
    %103 = vmatprep.mubr.bf16.mxu0 0
    %104 = vmatmul.mubr.bf16.gmra.mrb[0].mxu0 %v69
    %v105 = vpop.f32.mrb[0].mxu0
    %v106 = vadd.f32 %v48, %v105
    %v107 = vpop.f32.mrb[0].mxu0
    %v108 = vpop.f32.mrb[0].mxu0
    %v109 = vadd.f32 %v48, %v108
    %v110 = vpop.f32.mrb[0].mxu0
    %111 = vdwg.mxu0
    %v112 = vmax.f32 %v106, 0.0
    %v113 = vmax.f32 %v109, 0.0
    %v114 = vpack.c.bf16 %v113, %v112
    %v116 = vunpack.c.l.b16 %v114
    %v117 = vunpack.c.h.b16 %v114
    %v118 = vpack.c.b16 %v116, %v116
    %v119 = vpack.c.b16 %v117, %v117
    %122 = vst [vmem:[%s6] sm:$0xf] %v118
    %123 = vst [vmem:[%s6 + $0x4] sm:$0xf] %v119
    %v124 = vld [vmem:[#allocation2] sm:$0xf]
    %v125 = vld [vmem:[#allocation2 + $0x4] sm:$0xf]
    %v126 = vld [vmem:[#allocation2 + $0x8] sm:$0xf]
    %v127 = vld [vmem:[#allocation2 + $0xc] sm:$0xf]
    %v128 = vld [vmem:[#allocation2 + $0x10] sm:$0xf]
    %v129 = vld [vmem:[#allocation2 + $0x14] sm:$0xf]
    %v130 = vld [vmem:[#allocation2 + $0x18] sm:$0xf]
    %v131 = vld [vmem:[#allocation2 + $0x1c] sm:$0xf]
    %v132 = vld [vmem:[#allocation2 + $0x20] sm:$0xf]
    %v133 = vld [vmem:[#allocation2 + $0x24] sm:$0xf]
    %v134 = vld [vmem:[#allocation2 + $0x28] sm:$0xf]
    %v135 = vld [vmem:[#allocation2 + $0x2c] sm:$0xf]
    %v136 = vld [vmem:[#allocation2 + $0x30] sm:$0xf]
    %v137 = vld [vmem:[#allocation2 + $0x34] sm:$0xf]
    %v138 = vld [vmem:[#allocation2 + $0x38] sm:$0xf]
    %v139 = vld [vmem:[#allocation2 + $0x3c] sm:$0xf]
    %v140 = vld [vmem:[%s4] sm:$0x1]
    %v142 = vlaneseq
    %v143 = vshrl.u32 %v142, 7
    %v144 = vsub.s32 0, %v143
    %v145 = vrot.slane %v140, %v144
    %v163 = vunpack.c.l.b16 %v124
    %v164 = vunpack.c.l.b16 %v125
    %v165 = vunpack.c.l.b16 %v126
    %v166 = vunpack.c.l.b16 %v127
    %v167 = vunpack.c.l.b16 %v128
    %v168 = vunpack.c.l.b16 %v129
    %v169 = vunpack.c.l.b16 %v130
    %v170 = vunpack.c.l.b16 %v131
    %v171 = vunpack.c.l.b16 %v132
    %v172 = vunpack.c.l.b16 %v133
    %v173 = vunpack.c.l.b16 %v134
    %v174 = vunpack.c.l.b16 %v135
    %v175 = vunpack.c.l.b16 %v136
    %v176 = vunpack.c.l.b16 %v137
    %v177 = vunpack.c.l.b16 %v138
    %v178 = vunpack.c.l.b16 %v139
    %v179 = vpack.c.b16 %v164, %v163
    %v180 = vpack.c.b16 %v166, %v165
    %v181 = vpack.c.b16 %v168, %v167
    %v182 = vpack.c.b16 %v170, %v169
    %v183 = vpack.c.b16 %v172, %v171
    %v184 = vpack.c.b16 %v174, %v173
    %v185 = vpack.c.b16 %v176, %v175
    %v186 = vpack.c.b16 %v178, %v177
    %195 = vmatprep.subr.bf16.mxu0 0
    %196 = vmatpush1.bf16.msra.mxu0 %v179
    %197 = vmatprep.subr.bf16.mxu0 0
    %198 = vmatpush1.bf16.msra.mxu0 %v180
    %199 = vmatprep.subr.bf16.mxu0 0
    %200 = vmatpush1.bf16.msra.mxu0 %v181
    %201 = vmatprep.subr.bf16.mxu0 0
    %202 = vmatpush1.bf16.msra.mxu0 %v182
    %203 = vmatprep.subr.bf16.mxu0 0
    %204 = vmatpush1.bf16.msra.mxu0 %v183
    %205 = vmatprep.subr.bf16.mxu0 0
    %206 = vmatpush1.bf16.msra.mxu0 %v184
    %207 = vmatprep.subr.bf16.mxu0 0
    %208 = vmatpush1.bf16.msra.mxu0 %v185
    %209 = vmatprep.subr.bf16.mxu0 0
    %210 = vmatpush1.bf16.msra.mxu0 %v186
    %211 = vmatprep.subr.bf16.mxu0 0
    %212 = vmatpush1.bf16.msra.mxu0 0
    %213 = vmatprep.subr.bf16.mxu0 0
    %214 = vmatpush1.bf16.msra.mxu0 0
    %215 = vmatprep.subr.bf16.mxu0 0
    %216 = vmatpush1.bf16.msra.mxu0 0
    %217 = vmatprep.subr.bf16.mxu0 0
    %218 = vmatpush1.bf16.msra.mxu0 0
    %219 = vmatprep.subr.bf16.mxu0 0
    %220 = vmatpush1.bf16.msra.mxu0 0
    %221 = vmatprep.subr.bf16.mxu0 0
    %222 = vmatpush1.bf16.msra.mxu0 0
    %223 = vmatprep.subr.bf16.mxu0 0
    %224 = vmatpush1.bf16.msra.mxu0 0
    %225 = vmatprep.subr.bf16.mxu0 0
    %226 = vmatpush1.bf16.msra.mxu0 0
    %227 = vmatprep.mubr.bf16.mxu0 0
    %228 = vmatmul.mubr.bf16.gmra.mrb[0].mxu0 %v114
    %v229 = vpop.f32.mrb[0].mxu0
    %v230 = vadd.f32 %v145, %v229
    %v231 = vpop.f32.mrb[0].mxu0
    %v232 = vpop.f32.mrb[0].mxu0
    %v233 = vadd.f32 %v145, %v232
    %v234 = vpop.f32.mrb[0].mxu0
    %235 = vdwg.mxu0
    %236 = vst [vmem:[%s5] sm:$0xff] %v230
    %237 = vst [vmem:[%s5 + $0x8] sm:$0xff] %v233
    // Predicated region
    $region26: #{insmlp_forward.1} parent=1 // pred_check
      _
    $region27: #{insmlp_forward.1} parent=1 // pred_check_branch
      %239 = sbr.rel (0) target = $region29
    $region28: #{insmlp_forward.1} parent=1 // pred_region
      _
    $region29: #{insmlp_forward.1} parent=1 // pred_fallthru
      _
    // Predicated region
    $region30: #{insmlp_forward.1} parent=1 // pred_check
      _
    $region31: #{insmlp_forward.1} parent=1 // pred_check_branch
      %241 = sbr.rel (0) target = $region33
    $region32: #{insmlp_forward.1} parent=1 // pred_region
      _
    $region33: #{insmlp_forward.1} parent=1 // pred_fallthru
      _
    // Predicated region
    $region34: #{insmlp_forward.1} parent=1 // pred_check
      _
    $region35: #{insmlp_forward.1} parent=1 // pred_check_branch
      %243 = sbr.rel (0) target = $region37
    $region36: #{insmlp_forward.1} parent=1 // pred_region
      _
    $region37: #{insmlp_forward.1} parent=1 // pred_fallthru
      _
    // Predicated region
    $region38: #{insmlp_forward.1} parent=1 // pred_check
      _
    $region39: #{insmlp_forward.1} parent=1 // pred_check_branch
      %245 = sbr.rel (0) target = $region41
    $region40: #{insmlp_forward.1} parent=1 // pred_region
      _
    $region41: #{insmlp_forward.1} parent=1 // pred_fallthru
      _
    %246 = vsyncpa [#allocation3], 1

</llo_original>
